<compile_context>
chip_gen: v6e
topology: v6e:2x2x1
jax: 0.10.0
libtpu: 0.0.40
codegen_flags: <defaults>
</compile_context>

<pallas_src>
import functools

import jax
import jax.numpy as jnp
from jax.experimental import pallas as pl
from jax.experimental.pallas import tpu as pltpu


def _conv_im2col_kernel(w_ref, p_ref, b_ref, o_ref):
    """Whole conv in one kernel invocation (no grid).

    w_ref: (C_out, K)        flattened weights, K = C_in*KH*KW, order (ci, kh, kw)
    p_ref: (N, K, M)         per-image im2col patches, M = H_out*W_out
    b_ref: (C_out, 1)        bias column
    o_ref: (N, C_out, M)     NCHW-flat output (only a reshape away from NCHW)
    """
    w = w_ref[...]                       # (C_out, K)
    b = b_ref[...]                       # (C_out, 1) -> lane-broadcast in the add
    for n in range(p_ref.shape[0]):      # static tiny batch loop (N = 2)
        acc = jnp.dot(w, p_ref[n], preferred_element_type=jnp.float32)   # MXU
        o_ref[n] = (acc + b).astype(o_ref.dtype)                         # VPU add


@functools.partial(jax.jit, static_argnames=("padding",))
def conv2d_pallas(x_nchw, weight, bias, *, padding=1):
    """Conv2d, stride=1, symmetric `padding`, PyTorch semantics.

    x_nchw: (N, C_in, H, W)
    weight: (C_out, C_in, KH, KW)   (PyTorch OIHW layout)
    bias:   (C_out,)
    returns (N, C_out, H_out, W_out)
    """
    N, C_in, H, W = x_nchw.shape
    C_out, C_in_w, KH, KW = weight.shape
    assert C_in == C_in_w

    H_out = H + 2 * padding - KH + 1
    W_out = W + 2 * padding - KW + 1
    assert H_out > 0 and W_out > 0

    M = H_out * W_out                  # per-image spatial (lane) axis
    K_red = C_in * KH * KW             # MXU reduction depth (147)

    # --- im2col prep: fuses into the Pallas operand via allow_input_fusion ---
    x_pad = jnp.pad(
        x_nchw, ((0, 0), (0, 0), (padding, padding), (padding, padding))
    )
    # Reduction ordering (ci, kh, kw) matches weight.reshape(C_out, C_in*KH*KW).
    slabs = [
        x_pad[:, :, kh:kh + H_out, kw:kw + W_out]       # (N, C_in, H_out, W_out)
        for kh in range(KH)
        for kw in range(KW)
    ]
    patches = jnp.stack(slabs, axis=2).reshape(N, K_red, M)     # (N, 147, 144)

    w_flat = weight.reshape(C_out, K_red)                       # (3, 147)
    b_col = bias.reshape(C_out, 1)                              # (3, 1)

    # --- gridless Pallas call: whole problem resident in VMEM ----------------
    out = pl.pallas_call(
        _conv_im2col_kernel,
        out_shape=jax.ShapeDtypeStruct((N, C_out, M), x_nchw.dtype),
        in_specs=[
            pl.BlockSpec(memory_space=pltpu.MemorySpace.VMEM),  # weights
            pl.BlockSpec(memory_space=pltpu.MemorySpace.VMEM),  # patches
            pl.BlockSpec(memory_space=pltpu.MemorySpace.VMEM),  # bias
        ],
        out_specs=pl.BlockSpec(memory_space=pltpu.MemorySpace.VMEM),
        compiler_params=pltpu.CompilerParams(
            allow_input_fusion=[True, True, True],
        ),
    )(w_flat, patches, b_col)

    # (N, C_out, H_out*W_out) -> (N, C_out, H_out, W_out): contiguous reshape only.
    return out.reshape(N, C_out, H_out, W_out)


def init_params():
    """Deterministic synthetic parameters matching nn.Conv2d(3, 3, kernel_size=7)."""
    C_out, C_in, KH, KW = 3, 3, 7, 7
    kw_key, kb_key = jax.random.split(jax.random.PRNGKey(42))
    fan_in = C_in * KH * KW
    bound = 1.0 / jnp.sqrt(fan_in)
    weight = jax.random.uniform(
        kw_key, (C_out, C_in, KH, KW), jnp.float32, -bound, bound
    )
    bias = jax.random.uniform(kb_key, (C_out,), jnp.float32, -bound, bound)
    return weight, bias


if __name__ == "__main__":
    # Small input consistent with the module: N=2, C=3, H=W=16 (NCHW like PyTorch).
    x = jax.random.normal(jax.random.PRNGKey(0), (2, 3, 16, 16), jnp.float32)
    weight, bias = init_params()

    out = conv2d_pallas(x, weight, bias, padding=1)
    out = jax.block_until_ready(out)

    # Sanity check against XLA's conv (reference), same NCHW/OIHW semantics.
    ref = jax.lax.conv_general_dilated(
        x, weight, window_strides=(1, 1), padding=((1, 1), (1, 1)),
        dimension_numbers=("NCHW", "OIHW", "NCHW"),
    ) + bias.reshape(1, -1, 1, 1)
    assert out.shape == (2, 3, 12, 12), out.shape
    assert jnp.allclose(out, ref, atol=1e-4, rtol=1e-4)

    print("KERNEL_OK")
</pallas_src>

<mosaic_0001>
module attributes {stable_mosaic.version = 11 : i64} {
  func.func @_conv_im2col_kernel(%arg0: memref<3x147xf32, #tpu.memory_space<vmem>>, %arg1: memref<2x147x144xf32, #tpu.memory_space<vmem>>, %arg2: memref<3x1xf32, #tpu.memory_space<vmem>>, %arg3: memref<2x3x144xf32, #tpu.memory_space<vmem>>) attributes {dimension_semantics = [], scalar_prefetch = 0 : i64, scratch_operands = 0 : i64, tpu.core_type = #tpu.core_type<tc>} {
    %c0 = arith.constant 0 : index
    %c0_0 = arith.constant 0 : index
    %0 = vector.load %arg0[%c0, %c0_0] : memref<3x147xf32, #tpu.memory_space<vmem>>, vector<3x147xf32>
    %c0_1 = arith.constant 0 : index
    %c0_2 = arith.constant 0 : index
    %1 = vector.load %arg2[%c0_1, %c0_2] : memref<3x1xf32, #tpu.memory_space<vmem>>, vector<3x1xf32>
    %c0_3 = arith.constant 0 : index
    %c0_4 = arith.constant 0 : index
    %c0_5 = arith.constant 0 : index
    %2 = vector.load %arg1[%c0_3, %c0_4, %c0_5] : memref<2x147x144xf32, #tpu.memory_space<vmem>>, vector<1x147x144xf32>
    %3 = vector.shape_cast %2 : vector<1x147x144xf32> to vector<147x144xf32>
    %cst = arith.constant dense<0.000000e+00> : vector<3x144xf32>
    %4 = tpu.matmul %0, %3, %cst {dimension_numbers = #tpu.dot_dimension_numbers<[1], [0], [0], [1], [0, 0, 1, 1], [], []>} : vector<3x147xf32>, vector<147x144xf32>, vector<3x144xf32> -> vector<3x144xf32>
    %5 = vector.broadcast %1 : vector<3x1xf32> to vector<3x144xf32>
    %6 = arith.addf %4, %5 : vector<3x144xf32>
    %c0_6 = arith.constant 0 : index
    %c0_7 = arith.constant 0 : index
    %c0_8 = arith.constant 0 : index
    %7 = vector.load %arg3[%c0_6, %c0_7, %c0_8] : memref<2x3x144xf32, #tpu.memory_space<vmem>>, vector<1x3x144xf32>
    %8 = vector.shape_cast %7 : vector<1x3x144xf32> to vector<3x144xf32>
    %9 = vector.shape_cast %6 : vector<3x144xf32> to vector<1x3x144xf32>
    tpu.vector_store %arg3[%c0_6, %c0_7, %c0_8], %9 {strides = array<i32>} : memref<2x3x144xf32, #tpu.memory_space<vmem>>, vector<1x3x144xf32>,
    %c1 = arith.constant 1 : index
    %c0_9 = arith.constant 0 : index
    %c0_10 = arith.constant 0 : index
    %10 = vector.load %arg1[%c1, %c0_9, %c0_10] : memref<2x147x144xf32, #tpu.memory_space<vmem>>, vector<1x147x144xf32>
    %11 = vector.shape_cast %10 : vector<1x147x144xf32> to vector<147x144xf32>
    %cst_11 = arith.constant dense<0.000000e+00> : vector<3x144xf32>
    %12 = tpu.matmul %0, %11, %cst_11 {dimension_numbers = #tpu.dot_dimension_numbers<[1], [0], [0], [1], [0, 0, 1, 1], [], []>} : vector<3x147xf32>, vector<147x144xf32>, vector<3x144xf32> -> vector<3x144xf32>
    %13 = vector.broadcast %1 : vector<3x1xf32> to vector<3x144xf32>
    %14 = arith.addf %12, %13 : vector<3x144xf32>
    %c1_12 = arith.constant 1 : index
    %c0_13 = arith.constant 0 : index
    %c0_14 = arith.constant 0 : index
    %15 = vector.load %arg3[%c1_12, %c0_13, %c0_14] : memref<2x3x144xf32, #tpu.memory_space<vmem>>, vector<1x3x144xf32>
    %16 = vector.shape_cast %15 : vector<1x3x144xf32> to vector<3x144xf32>
    %17 = vector.shape_cast %14 : vector<3x144xf32> to vector<1x3x144xf32>
    tpu.vector_store %arg3[%c1_12, %c0_13, %c0_14], %17 {strides = array<i32>} : memref<2x3x144xf32, #tpu.memory_space<vmem>>, vector<1x3x144xf32>,
    return
  }
}

</mosaic_0001>

<llo_original>
// kernel: conv2d_pallas.1
$region0: #{conv2d_pallas.1}
  #allocation0 [shape = 'u32[]', space=smem, size = 0x4, offset = 0x4, fixed_abs, tag = 'smem constant byte address 0x4 - core index']
  #allocation1 [shape = 'u32[144,128]{1,0:T(1,128)}', space=vmem, size = 0x12000, scoped, tag = 'internal scratch']
  %s0 = inlined_call_operand.vmem [shape: f32[3,147], index: 0, kind: input, shape index: {}]
  %s1 = inlined_call_operand.vmem [shape: f32[2,147,144], index: 1, kind: input, shape index: {}]
  %s2 = inlined_call_operand.vmem [shape: f32[3,1], index: 2, kind: input, shape index: {}]
  %s3 = inlined_call_operand.vmem [shape: f32[2,3,144], index: 3, kind: output, shape index: {}]
  %s4 = sld [smem:[#allocation0]]
  $region22: #{conv2d_pallas.1} parent=0
    _
  %s6 = ssub.s32 1, %s4
  %s7 = scalar_select 0, %s6, %s4
  // Predicated region
  $region2: #{conv2d_pallas.1} parent=0 // pred_check
    _
  $region3: #{conv2d_pallas.1} parent=0 // pred_check_branch
    %9 = sbr.rel (0) target = $region5
  $region4: #{conv2d_pallas.1} parent=0 // pred_region
    _
  $region5: #{conv2d_pallas.1} parent=0 // pred_fallthru
    _
  // Predicated region
  $region6: #{conv2d_pallas.1} parent=0 // pred_check
    _
  $region7: #{conv2d_pallas.1} parent=0 // pred_check_branch
    %11 = sbr.rel (0) target = $region9
  $region8: #{conv2d_pallas.1} parent=0 // pred_region
    _
  $region9: #{conv2d_pallas.1} parent=0 // pred_fallthru
    _
  // Predicated region
  $region10: #{conv2d_pallas.1} parent=0 // pred_check
    _
  $region11: #{conv2d_pallas.1} parent=0 // pred_check_branch
    %13 = sbr.rel (0) target = $region13
  $region12: #{conv2d_pallas.1} parent=0 // pred_region
    _
  $region13: #{conv2d_pallas.1} parent=0 // pred_fallthru
    _
  %v14 = vld [vmem:[%s0] sm:$0x77]
  %v15 = vld [vmem:[%s2] sm:$0x7]
  %v16 = vld [vmem:[%s1] sm:$0xff]
  %v17 = vld [vmem:[%s1 + $0x8] sm:$0xff]
  %v18 = vld [vmem:[%s1 + $0x10] sm:$0xff]
  %v19 = vld [vmem:[%s1 + $0x18] sm:$0xff]
  %v20 = vld [vmem:[%s1 + $0x20] sm:$0xff]
  %v21 = vld [vmem:[%s1 + $0x28] sm:$0xff]
  %v22 = vld [vmem:[%s1 + $0x30] sm:$0xff]
  %v23 = vld [vmem:[%s1 + $0x38] sm:$0xff]
  %v24 = vld [vmem:[%s1 + $0x40] sm:$0xff]
  %v25 = vld [vmem:[%s1 + $0x48] sm:$0xff]
  %v26 = vld [vmem:[%s1 + $0x50] sm:$0xff]
  %v27 = vld [vmem:[%s1 + $0x58] sm:$0xff]
  %v28 = vld [vmem:[%s1 + $0x60] sm:$0xff]
  %v29 = vld [vmem:[%s1 + $0x68] sm:$0xff]
  %v30 = vld [vmem:[%s1 + $0x70] sm:$0xff]
  %v31 = vld [vmem:[%s1 + $0x78] sm:$0xff]
  %v32 = vld [vmem:[%s1 + $0x80] sm:$0xff]
  %v33 = vld [vmem:[%s1 + $0x88] sm:$0xff]
  %v34 = vld [vmem:[%s1 + $0x90] sm:$0xff]
  %v35 = vld [vmem:[%s1 + $0x98] sm:$0xff]
  %v36 = vld [vmem:[%s1 + $0xa0] sm:$0xff]
  %v37 = vld [vmem:[%s1 + $0xa8] sm:$0xff]
  %v38 = vld [vmem:[%s1 + $0xb0] sm:$0xff]
  %v39 = vld [vmem:[%s1 + $0xb8] sm:$0xff]
  %v40 = vld [vmem:[%s1 + $0xc0] sm:$0xff]
  %v41 = vld [vmem:[%s1 + $0xc8] sm:$0xff]
  %v42 = vld [vmem:[%s1 + $0xd0] sm:$0xff]
  %v43 = vld [vmem:[%s1 + $0xd8] sm:$0xff]
  %v44 = vld [vmem:[%s1 + $0xe0] sm:$0xff]
  %v45 = vld [vmem:[%s1 + $0xe8] sm:$0xff]
  %v46 = vld [vmem:[%s1 + $0xf0] sm:$0xff]
  %v47 = vld [vmem:[%s1 + $0xf8] sm:$0xff]
  %v48 = vld [vmem:[%s1 + $0x100] sm:$0xff]
  %v49 = vld [vmem:[%s1 + $0x108] sm:$0xff]
  %v50 = vld [vmem:[%s1 + $0x110] sm:$0xff]
  %v51 = vld [vmem:[%s1 + $0x118] sm:$0xff]
  %v52 = vld [vmem:[%s1 + $0x120] sm:$0x7]
  %v53 = vld [vmem:[%s1 + $0x128] sm:$0x7]
  %55 = vset.pattern.permute.xlu0 0
  %56 = vperm.xlu0 %55, %v15
  %v57 = vpop.permute.xlu0 %56
  %v60 = vcombine.high %v14, %v14
  %vm61 = vcmask 154624
  %v62 = vsel %vm61, %v60, 0
  %vm64 = vcmask 1042432
  %v66 = vsel %vm64, %v52, 0
  %v69 = vsel %vm64, %v53, 0
  %71 = vmatprep.subr.mxu0 %v47
  %72 = vmatpush1.msra.mxu0 %v46
  %73 = vmatprep.subr.mxu0 %v45
  %74 = vmatpush1.msra.mxu0 %v44
  %75 = vmatprep.subr.mxu0 %v43
  %76 = vmatpush1.msra.mxu0 %v42
  %77 = vmatprep.subr.mxu0 %v41
  %78 = vmatpush1.msra.mxu0 %v40
  %79 = vmatprep.subr.mxu0 %v39
  %80 = vmatpush1.msra.mxu0 %v38
  %81 = vmatprep.subr.mxu0 %v37
  %82 = vmatpush1.msra.mxu0 %v36
  %83 = vmatprep.subr.mxu0 %v35
  %84 = vmatpush1.msra.mxu0 %v34
  %85 = vmatprep.subr.mxu0 %v33
  %86 = vmatpush1.msra.mxu0 %v32
  %87 = vmatprep.subr.mxu0 %v31
  %88 = vmatpush1.msra.mxu0 %v30
  %89 = vmatprep.subr.mxu0 %v29
  %90 = vmatpush1.msra.mxu0 %v28
  %91 = vmatprep.subr.mxu0 %v27
  %92 = vmatpush1.msra.mxu0 %v26
  %93 = vmatprep.subr.mxu0 %v25
  %94 = vmatpush1.msra.mxu0 %v24
  %95 = vmatprep.subr.mxu0 %v23
  %96 = vmatpush1.msra.mxu0 %v22
  %97 = vmatprep.subr.mxu0 %v21
  %98 = vmatpush1.msra.mxu0 %v20
  %99 = vmatprep.subr.mxu0 %v19
  %100 = vmatpush1.msra.mxu0 %v18
  %101 = vmatprep.subr.mxu0 %v17
  %102 = vmatpush1.msra.mxu0 %v16
  %103 = vmatprep.subr.mxu0 0.0
  %104 = vmatpush2.msra.mxu0 0.0
  %105 = vmatprep.subr.mxu0 0.0
  %106 = vmatpush2.msra.mxu0 0.0
  %107 = vmatprep.subr.mxu0 0.0
  %108 = vmatpush2.msra.mxu0 0.0
  %109 = vmatprep.subr.mxu0 0.0
  %110 = vmatpush2.msra.mxu0 0.0
  %111 = vmatprep.subr.mxu0 0.0
  %112 = vmatpush2.msra.mxu0 0.0
  %113 = vmatprep.subr.mxu0 0.0
  %114 = vmatpush2.msra.mxu0 0.0
  %115 = vmatprep.subr.mxu0 0.0
  %116 = vmatpush2.msra.mxu0 0.0
  %117 = vmatprep.subr.mxu0 0.0
  %118 = vmatpush2.msra.mxu0 0.0
  %119 = vmatprep.subr.mxu0 0.0
  %120 = vmatpush2.msra.mxu0 0.0
  %121 = vmatprep.subr.mxu0 0.0
  %122 = vmatpush2.msra.mxu0 0.0
  %123 = vmatprep.subr.mxu0 0.0
  %124 = vmatpush2.msra.mxu0 0.0
  %125 = vmatprep.subr.mxu0 0.0
  %126 = vmatpush2.msra.mxu0 0.0
  %127 = vmatprep.subr.mxu0 0.0
  %128 = vmatpush2.msra.mxu0 0.0
  %129 = vmatprep.subr.mxu0 %v69
  %130 = vmatpush2.msra.mxu0 %v66
  %131 = vmatprep.subr.mxu0 %v51
  %132 = vmatpush2.msra.mxu0 %v50
  %133 = vmatprep.subr.mxu0 %v49
  %134 = vmatpush2.msra.mxu0 %v48
  %135 = vmatprep.mubr.f32.mxu0 %v62
  %136 = vmatmul.mubr.f32.gmra.mxu0 %v14
  %v137 = vpop.f32.mrf.mxu0
  %v138 = vadd.f32 %v57, %v137
  %v139 = vpop.f32.mrf.mxu0
  %v140 = vadd.f32 %v57, %v139
  %141 = vdwg.mxu0
  %v144 = vcombine.low %v138, %v140
  %vm146 = vcmask 129028
  %vm147 = vmor %vm146, %vm64
  %148 = vst.msk [vmem:[%s3] sm:$0x77] %vm147, %v144
  %s149 = scalar_lea.vmem %s1, 304
  %v150 = vld [vmem:[%s149] sm:$0xff]
  %v151 = vld [vmem:[%s149 + $0x8] sm:$0xff]
  %v152 = vld [vmem:[%s149 + $0x10] sm:$0xff]
  %v153 = vld [vmem:[%s149 + $0x18] sm:$0xff]
  %v154 = vld [vmem:[%s149 + $0x20] sm:$0xff]
  %v155 = vld [vmem:[%s149 + $0x28] sm:$0xff]
  %v156 = vld [vmem:[%s149 + $0x30] sm:$0xff]
  %v157 = vld [vmem:[%s149 + $0x38] sm:$0xff]
  %v158 = vld [vmem:[%s149 + $0x40] sm:$0xff]
  %v159 = vld [vmem:[%s149 + $0x48] sm:$0xff]
  %v160 = vld [vmem:[%s149 + $0x50] sm:$0xff]
  %v161 = vld [vmem:[%s149 + $0x58] sm:$0xff]
  %v162 = vld [vmem:[%s149 + $0x60] sm:$0xff]
  %v163 = vld [vmem:[%s149 + $0x68] sm:$0xff]
  %v164 = vld [vmem:[%s149 + $0x70] sm:$0xff]
  %v165 = vld [vmem:[%s149 + $0x78] sm:$0xff]
  %v166 = vld [vmem:[%s149 + $0x80] sm:$0xff]
  %v167 = vld [vmem:[%s149 + $0x88] sm:$0xff]
  %v168 = vld [vmem:[%s149 + $0x90] sm:$0xff]
  %v169 = vld [vmem:[%s149 + $0x98] sm:$0xff]
  %v170 = vld [vmem:[%s149 + $0xa0] sm:$0xff]
  %v171 = vld [vmem:[%s149 + $0xa8] sm:$0xff]
  %v172 = vld [vmem:[%s149 + $0xb0] sm:$0xff]
  %v173 = vld [vmem:[%s149 + $0xb8] sm:$0xff]
  %v174 = vld [vmem:[%s149 + $0xc0] sm:$0xff]
  %v175 = vld [vmem:[%s149 + $0xc8] sm:$0xff]
  %v176 = vld [vmem:[%s149 + $0xd0] sm:$0xff]
  %v177 = vld [vmem:[%s149 + $0xd8] sm:$0xff]
  %v178 = vld [vmem:[%s149 + $0xe0] sm:$0xff]
  %v179 = vld [vmem:[%s149 + $0xe8] sm:$0xff]
  %v180 = vld [vmem:[%s149 + $0xf0] sm:$0xff]
  %v181 = vld [vmem:[%s149 + $0xf8] sm:$0xff]
  %v182 = vld [vmem:[%s149 + $0x100] sm:$0xff]
  %v183 = vld [vmem:[%s149 + $0x108] sm:$0xff]
  %v184 = vld [vmem:[%s149 + $0x110] sm:$0xff]
  %v185 = vld [vmem:[%s149 + $0x118] sm:$0xff]
  %v186 = vld [vmem:[%s149 + $0x120] sm:$0x7]
  %v187 = vld [vmem:[%s149 + $0x128] sm:$0x7]
  %v189 = vsel %vm64, %v186, 0
  %v192 = vsel %vm64, %v187, 0
  %194 = vmatprep.subr.mxu0 %v181
  %195 = vmatpush1.msra.mxu0 %v180
  %196 = vmatprep.subr.mxu0 %v179
  %197 = vmatpush1.msra.mxu0 %v178
  %198 = vmatprep.subr.mxu0 %v177
  %199 = vmatpush1.msra.mxu0 %v176
  %200 = vmatprep.subr.mxu0 %v175
  %201 = vmatpush1.msra.mxu0 %v174
  %202 = vmatprep.subr.mxu0 %v173
  %203 = vmatpush1.msra.mxu0 %v172
  %204 = vmatprep.subr.mxu0 %v171
  %205 = vmatpush1.msra.mxu0 %v170
  %206 = vmatprep.subr.mxu0 %v169
  %207 = vmatpush1.msra.mxu0 %v168
  %208 = vmatprep.subr.mxu0 %v167
  %209 = vmatpush1.msra.mxu0 %v166
  %210 = vmatprep.subr.mxu0 %v165
  %211 = vmatpush1.msra.mxu0 %v164
  %212 = vmatprep.subr.mxu0 %v163
  %213 = vmatpush1.msra.mxu0 %v162
  %214 = vmatprep.subr.mxu0 %v161
  %215 = vmatpush1.msra.mxu0 %v160
  %216 = vmatprep.subr.mxu0 %v159
  %217 = vmatpush1.msra.mxu0 %v158
  %218 = vmatprep.subr.mxu0 %v157
  %219 = vmatpush1.msra.mxu0 %v156
  %220 = vmatprep.subr.mxu0 %v155
  %221 = vmatpush1.msra.mxu0 %v154
  %222 = vmatprep.subr.mxu0 %v153
  %223 = vmatpush1.msra.mxu0 %v152
  %224 = vmatprep.subr.mxu0 %v151
  %225 = vmatpush1.msra.mxu0 %v150
  %226 = vmatprep.subr.mxu0 0.0
  %227 = vmatpush2.msra.mxu0 0.0
  %228 = vmatprep.subr.mxu0 0.0
  %229 = vmatpush2.msra.mxu0 0.0
  %230 = vmatprep.subr.mxu0 0.0
  %231 = vmatpush2.msra.mxu0 0.0
  %232 = vmatprep.subr.mxu0 0.0
  %233 = vmatpush2.msra.mxu0 0.0
  %234 = vmatprep.subr.mxu0 0.0
  %235 = vmatpush2.msra.mxu0 0.0
  %236 = vmatprep.subr.mxu0 0.0
  %237 = vmatpush2.msra.mxu0 0.0
  %238 = vmatprep.subr.mxu0 0.0
  %239 = vmatpush2.msra.mxu0 0.0
  %240 = vmatprep.subr.mxu0 0.0
  %241 = vmatpush2.msra.mxu0 0.0
  %242 = vmatprep.subr.mxu0 0.0
  %243 = vmatpush2.msra.mxu0 0.0
  %244 = vmatprep.subr.mxu0 0.0
  %245 = vmatpush2.msra.mxu0 0.0
  %246 = vmatprep.subr.mxu0 0.0
  %247 = vmatpush2.msra.mxu0 0.0
  %248 = vmatprep.subr.mxu0 0.0
  %249 = vmatpush2.msra.mxu0 0.0
  %250 = vmatprep.subr.mxu0 0.0
  %251 = vmatpush2.msra.mxu0 0.0
  %252 = vmatprep.subr.mxu0 %v192
  %253 = vmatpush2.msra.mxu0 %v189
  %254 = vmatprep.subr.mxu0 %v185
  %255 = vmatpush2.msra.mxu0 %v184
  %256 = vmatprep.subr.mxu0 %v183
  %257 = vmatpush2.msra.mxu0 %v182
  %258 = vmatprep.mubr.f32.mxu0 %v62
  %259 = vmatmul.mubr.f32.gmra.mxu0 %v14
  %v260 = vpop.f32.mrf.mxu0
  %v261 = vadd.f32 %v57, %v260
  %v262 = vpop.f32.mrf.mxu0
  %v263 = vadd.f32 %v57, %v262
  %264 = vdwg.mxu0
  %v267 = vcombine.low %v261, %v263
  %s269 = scalar_lea.vmem %s3, 8
  %270 = vst.msk [vmem:[%s269] sm:$0x77] %vm147, %v267
  // Predicated region
  $region14: #{conv2d_pallas.1} parent=0 // pred_check
    _
  $region15: #{conv2d_pallas.1} parent=0 // pred_check_branch
    %272 = sbr.rel (0) target = $region17
  $region16: #{conv2d_pallas.1} parent=0 // pred_region
    _
  $region17: #{conv2d_pallas.1} parent=0 // pred_fallthru
    _
  // Predicated region
  $region18: #{conv2d_pallas.1} parent=0 // pred_check
    _
  $region19: #{conv2d_pallas.1} parent=0 // pred_check_branch
    %274 = sbr.rel (0) target = $region21
  $region20: #{conv2d_pallas.1} parent=0 // pred_region
    _
  $region21: #{conv2d_pallas.1} parent=0 // pred_fallthru
    _

</llo_original>
